<compile_context>
chip_gen: v6e
topology: v6e:2x2x1
jax: 0.10.0
libtpu: 0.0.40
codegen_flags: <defaults>
</compile_context>

<pallas_src>
import functools

import jax
import jax.numpy as jnp
from jax.experimental import pallas as pl
from jax.experimental.pallas import tpu as pltpu

LANE = 128           # lane-dense width for padded weights / activations / output
N_LAYERS = 5
D_IN_PAD = 8         # input feature dim (4) padded to one sublane group
DIMS = [(4, 8), (8, 15), (15, 100), (100, 15), (15, 3)]   # torch Linear shapes


def _silu(z):
    # SiLU(z) = z * sigmoid(z) = 0.5 * z * (tanh(z/2) + 1): exact, one EUP op.
    return 0.5 * z * (jnp.tanh(0.5 * z) + 1.0)


def mlp_kernel(x_ref, w0_ref, w_ref, b_ref, o_ref):
    # x_ref: (tb, 8) f32            w0_ref: (8, 128) bf16
    # w_ref: (4, 128, 128) bf16     b_ref:  (5, 128) f32     o_ref: (tb, 128) f32
    z = (jnp.dot(x_ref[...].astype(jnp.bfloat16), w0_ref[...],
                 preferred_element_type=jnp.float32)
         + b_ref[pl.ds(0, 1), :])
    h = _silu(z)
    for i in range(1, N_LAYERS - 1):
        z = (jnp.dot(h.astype(jnp.bfloat16), w_ref[i - 1],
                     preferred_element_type=jnp.float32)
             + b_ref[pl.ds(i, 1), :])
        h = _silu(z)
    o_ref[...] = (jnp.dot(h.astype(jnp.bfloat16), w_ref[N_LAYERS - 2],
                          preferred_element_type=jnp.float32)
                  + b_ref[pl.ds(N_LAYERS - 1, 1), :]).astype(o_ref.dtype)


def _batch_tiling(B, tb_max=512):
    """Pick (tile_rows, n_tiles, padded_batch); tiles are multiples of 8 rows."""
    bp8 = -(-B // 8) * 8
    if bp8 <= 2 * tb_max:
        # Small/medium batch: split into two equal tiles so both v7x
        # TensorCores get one (falls back to a single tile if batch < 16).
        tb = max(8, -(-bp8 // 16) * 8)
    else:
        tb = tb_max
    n_tiles = -(-bp8 // tb)
    return tb, n_tiles, n_tiles * tb


@functools.partial(jax.jit, static_argnames=("n_out", "tb_max"))
def net_forward(x, w0, w_slab, b_slab, *, n_out=3, tb_max=512):
    """Whole 5-layer MLP in one Pallas call; batch tiled over a parallel grid."""
    B, d_in = x.shape
    tb, n_tiles, bp = _batch_tiling(B, tb_max)
    # Narrow (bp, 8) zero pad: pad rows/cols are zero and hit zero weight rows.
    xp = jnp.zeros((bp, D_IN_PAD), jnp.float32).at[:B, :d_in].set(
        x.astype(jnp.float32))

    out = pl.pallas_call(
        mlp_kernel,
        out_shape=jax.ShapeDtypeStruct((bp, LANE), jnp.float32),
        grid=(n_tiles,),
        in_specs=[
            pl.BlockSpec((tb, D_IN_PAD), lambda i: (i, 0)),            # x batch tile (narrow)
            pl.BlockSpec((D_IN_PAD, LANE), lambda i: (0, 0)),          # layer-0 weight (resident)
            pl.BlockSpec((N_LAYERS - 1, LANE, LANE),
                         lambda i: (0, 0, 0)),                         # layers 1..4 weights (resident)
            pl.BlockSpec((N_LAYERS, LANE), lambda i: (0, 0)),          # biases (resident)
        ],
        out_specs=pl.BlockSpec((tb, LANE), lambda i: (i, 0)),
        compiler_params=pltpu.CompilerParams(
            dimension_semantics=("parallel",)),
    )(xp, w0, w_slab, b_slab)
    return out[:B, :n_out]


def init_params(key):
    """Deterministic init matching torch.nn.Linear (stored as (in, out))."""
    params = []
    for i, (d_in, d_out) in enumerate(DIMS):
        kw, kb = jax.random.split(jax.random.fold_in(key, i))
        bound = 1.0 / jnp.sqrt(d_in)
        w = jax.random.uniform(kw, (d_in, d_out), jnp.float32, -bound, bound)
        b = jax.random.uniform(kb, (d_out,), jnp.float32, -bound, bound)
        params.append((w, b))
    return params


def pack_params(params):
    """Zero-pad & pack: layer-0 weight (8,128) bf16, layers 1..4 stacked as
    (4,128,128) bf16, all biases as (5,128) f32."""
    w0 = jnp.zeros((D_IN_PAD, LANE), jnp.bfloat16)
    w0 = w0.at[:DIMS[0][0], :DIMS[0][1]].set(params[0][0].astype(jnp.bfloat16))

    w_slab = jnp.zeros((N_LAYERS - 1, LANE, LANE), jnp.bfloat16)
    b_slab = jnp.zeros((N_LAYERS, LANE), jnp.float32)
    b_slab = b_slab.at[0, :DIMS[0][1]].set(params[0][1])
    for i in range(1, N_LAYERS):
        w, b = params[i]
        d_in, d_out = w.shape
        w_slab = w_slab.at[i - 1, :d_in, :d_out].set(w.astype(jnp.bfloat16))
        b_slab = b_slab.at[i, :d_out].set(b)
    return w0, w_slab, b_slab


def net_forward_ref(x, params):
    h = x
    for i, (w, b) in enumerate(params):
        h = h @ w + b
        if i < len(params) - 1:
            h = h * jax.nn.sigmoid(h)
    return h


if __name__ == "__main__":
    key = jax.random.PRNGKey(0)
    k_x, k_p = jax.random.split(key)

    B = 256                      # splits into two 128-row tiles -> exercises the parallel grid
    x = jax.random.normal(k_x, (B, 4), jnp.float32)
    params = init_params(k_p)
    w0, w_slab, b_slab = pack_params(params)

    out = net_forward(x, w0, w_slab, b_slab)
    out = jax.block_until_ready(out)

    ref = net_forward_ref(x, params)
    assert out.shape == (B, 3)
    # Tolerance accounts for bf16 dot inputs (f32 accumulation, exact SiLU).
    assert jnp.allclose(out, ref, atol=2e-2, rtol=2e-2), float(jnp.max(jnp.abs(out - ref)))
    print("KERNEL_OK")
</pallas_src>

<mosaic_0001>
module attributes {stable_mosaic.version = 11 : i64} {
  func.func @mlp_kernel(%arg0: i32, %arg1: memref<128x8xf32, #tpu.memory_space<vmem>>, %arg2: memref<8x128xbf16, #tpu.memory_space<vmem>>, %arg3: memref<4x128x128xbf16, #tpu.memory_space<vmem>>, %arg4: memref<5x128xf32, #tpu.memory_space<vmem>>, %arg5: memref<128x128xf32, #tpu.memory_space<vmem>>) attributes {dimension_semantics = [#tpu.dimension_semantics<parallel>], iteration_bounds = array<i64: 2>, scalar_prefetch = 0 : i64, scratch_operands = 0 : i64, tpu.core_type = #tpu.core_type<tc>, window_params = [{transform_indices = @transform_0, window_bounds = array<i64: 128, 8>}, {pipeline_mode = #tpu.pipeline_mode<synchronous>, transform_indices = @transform_1, window_bounds = array<i64: 8, 128>}, {pipeline_mode = #tpu.pipeline_mode<synchronous>, transform_indices = @transform_2, window_bounds = array<i64: 4, 128, 128>}, {pipeline_mode = #tpu.pipeline_mode<synchronous>, transform_indices = @transform_3, window_bounds = array<i64: 5, 128>}, {transform_indices = @transform_4, window_bounds = array<i64: 128, 128>}]} {
    %c0 = arith.constant 0 : index
    %c0_0 = arith.constant 0 : index
    %0 = vector.load %arg1[%c0, %c0_0] : memref<128x8xf32, #tpu.memory_space<vmem>>, vector<128x8xf32>
    %1 = arith.truncf %0 : vector<128x8xf32> to vector<128x8xbf16>
    %c0_1 = arith.constant 0 : index
    %c0_2 = arith.constant 0 : index
    %2 = vector.load %arg2[%c0_1, %c0_2] : memref<8x128xbf16, #tpu.memory_space<vmem>>, vector<8x128xbf16>
    %cst = arith.constant dense<0.000000e+00> : vector<128x128xf32>
    %3 = tpu.matmul %1, %2, %cst {dimension_numbers = #tpu.dot_dimension_numbers<[1], [0], [0], [1], [0, 0, 1, 1], [], []>} : vector<128x8xbf16>, vector<8x128xbf16>, vector<128x128xf32> -> vector<128x128xf32>
    %c0_3 = arith.constant 0 : index
    %c0_4 = arith.constant 0 : index
    %4 = vector.load %arg4[%c0_3, %c0_4] : memref<5x128xf32, #tpu.memory_space<vmem>>, vector<1x128xf32>
    %5 = vector.broadcast %4 : vector<1x128xf32> to vector<128x128xf32>
    %6 = arith.addf %3, %5 : vector<128x128xf32>
    %cst_5 = arith.constant 5.000000e-01 : f32
    %7 = vector.broadcast %cst_5 : f32 to vector<128x128xf32>
    %8 = arith.mulf %7, %6 : vector<128x128xf32>
    %cst_6 = arith.constant 5.000000e-01 : f32
    %9 = vector.broadcast %cst_6 : f32 to vector<128x128xf32>
    %10 = arith.mulf %9, %6 : vector<128x128xf32>
    %11 = math.tanh %10 : vector<128x128xf32>
    %cst_7 = arith.constant 1.000000e+00 : f32
    %12 = vector.broadcast %cst_7 : f32 to vector<128x128xf32>
    %13 = arith.addf %11, %12 : vector<128x128xf32>
    %14 = arith.mulf %8, %13 : vector<128x128xf32>
    %15 = arith.truncf %14 : vector<128x128xf32> to vector<128x128xbf16>
    %c0_8 = arith.constant 0 : index
    %c0_9 = arith.constant 0 : index
    %c0_10 = arith.constant 0 : index
    %16 = vector.load %arg3[%c0_8, %c0_9, %c0_10] : memref<4x128x128xbf16, #tpu.memory_space<vmem>>, vector<1x128x128xbf16>
    %17 = vector.shape_cast %16 : vector<1x128x128xbf16> to vector<128x128xbf16>
    %cst_11 = arith.constant dense<0.000000e+00> : vector<128x128xf32>
    %18 = tpu.matmul %15, %17, %cst_11 {dimension_numbers = #tpu.dot_dimension_numbers<[1], [0], [0], [1], [0, 0, 1, 1], [], []>} : vector<128x128xbf16>, vector<128x128xbf16>, vector<128x128xf32> -> vector<128x128xf32>
    %c1 = arith.constant 1 : index
    %c0_12 = arith.constant 0 : index
    %19 = vector.load %arg4[%c1, %c0_12] : memref<5x128xf32, #tpu.memory_space<vmem>>, vector<1x128xf32>
    %20 = vector.broadcast %19 : vector<1x128xf32> to vector<128x128xf32>
    %21 = arith.addf %18, %20 : vector<128x128xf32>
    %cst_13 = arith.constant 5.000000e-01 : f32
    %22 = vector.broadcast %cst_13 : f32 to vector<128x128xf32>
    %23 = arith.mulf %22, %21 : vector<128x128xf32>
    %cst_14 = arith.constant 5.000000e-01 : f32
    %24 = vector.broadcast %cst_14 : f32 to vector<128x128xf32>
    %25 = arith.mulf %24, %21 : vector<128x128xf32>
    %26 = math.tanh %25 : vector<128x128xf32>
    %cst_15 = arith.constant 1.000000e+00 : f32
    %27 = vector.broadcast %cst_15 : f32 to vector<128x128xf32>
    %28 = arith.addf %26, %27 : vector<128x128xf32>
    %29 = arith.mulf %23, %28 : vector<128x128xf32>
    %30 = arith.truncf %29 : vector<128x128xf32> to vector<128x128xbf16>
    %c1_16 = arith.constant 1 : index
    %c0_17 = arith.constant 0 : index
    %c0_18 = arith.constant 0 : index
    %31 = vector.load %arg3[%c1_16, %c0_17, %c0_18] : memref<4x128x128xbf16, #tpu.memory_space<vmem>>, vector<1x128x128xbf16>
    %32 = vector.shape_cast %31 : vector<1x128x128xbf16> to vector<128x128xbf16>
    %cst_19 = arith.constant dense<0.000000e+00> : vector<128x128xf32>
    %33 = tpu.matmul %30, %32, %cst_19 {dimension_numbers = #tpu.dot_dimension_numbers<[1], [0], [0], [1], [0, 0, 1, 1], [], []>} : vector<128x128xbf16>, vector<128x128xbf16>, vector<128x128xf32> -> vector<128x128xf32>
    %c2 = arith.constant 2 : index
    %c0_20 = arith.constant 0 : index
    %34 = vector.load %arg4[%c2, %c0_20] : memref<5x128xf32, #tpu.memory_space<vmem>>, vector<1x128xf32>
    %35 = vector.broadcast %34 : vector<1x128xf32> to vector<128x128xf32>
    %36 = arith.addf %33, %35 : vector<128x128xf32>
    %cst_21 = arith.constant 5.000000e-01 : f32
    %37 = vector.broadcast %cst_21 : f32 to vector<128x128xf32>
    %38 = arith.mulf %37, %36 : vector<128x128xf32>
    %cst_22 = arith.constant 5.000000e-01 : f32
    %39 = vector.broadcast %cst_22 : f32 to vector<128x128xf32>
    %40 = arith.mulf %39, %36 : vector<128x128xf32>
    %41 = math.tanh %40 : vector<128x128xf32>
    %cst_23 = arith.constant 1.000000e+00 : f32
    %42 = vector.broadcast %cst_23 : f32 to vector<128x128xf32>
    %43 = arith.addf %41, %42 : vector<128x128xf32>
    %44 = arith.mulf %38, %43 : vector<128x128xf32>
    %45 = arith.truncf %44 : vector<128x128xf32> to vector<128x128xbf16>
    %c2_24 = arith.constant 2 : index
    %c0_25 = arith.constant 0 : index
    %c0_26 = arith.constant 0 : index
    %46 = vector.load %arg3[%c2_24, %c0_25, %c0_26] : memref<4x128x128xbf16, #tpu.memory_space<vmem>>, vector<1x128x128xbf16>
    %47 = vector.shape_cast %46 : vector<1x128x128xbf16> to vector<128x128xbf16>
    %cst_27 = arith.constant dense<0.000000e+00> : vector<128x128xf32>
    %48 = tpu.matmul %45, %47, %cst_27 {dimension_numbers = #tpu.dot_dimension_numbers<[1], [0], [0], [1], [0, 0, 1, 1], [], []>} : vector<128x128xbf16>, vector<128x128xbf16>, vector<128x128xf32> -> vector<128x128xf32>
    %c3 = arith.constant 3 : index
    %c0_28 = arith.constant 0 : index
    %49 = vector.load %arg4[%c3, %c0_28] : memref<5x128xf32, #tpu.memory_space<vmem>>, vector<1x128xf32>
    %50 = vector.broadcast %49 : vector<1x128xf32> to vector<128x128xf32>
    %51 = arith.addf %48, %50 : vector<128x128xf32>
    %cst_29 = arith.constant 5.000000e-01 : f32
    %52 = vector.broadcast %cst_29 : f32 to vector<128x128xf32>
    %53 = arith.mulf %52, %51 : vector<128x128xf32>
    %cst_30 = arith.constant 5.000000e-01 : f32
    %54 = vector.broadcast %cst_30 : f32 to vector<128x128xf32>
    %55 = arith.mulf %54, %51 : vector<128x128xf32>
    %56 = math.tanh %55 : vector<128x128xf32>
    %cst_31 = arith.constant 1.000000e+00 : f32
    %57 = vector.broadcast %cst_31 : f32 to vector<128x128xf32>
    %58 = arith.addf %56, %57 : vector<128x128xf32>
    %59 = arith.mulf %53, %58 : vector<128x128xf32>
    %60 = arith.truncf %59 : vector<128x128xf32> to vector<128x128xbf16>
    %c3_32 = arith.constant 3 : index
    %c0_33 = arith.constant 0 : index
    %c0_34 = arith.constant 0 : index
    %61 = vector.load %arg3[%c3_32, %c0_33, %c0_34] : memref<4x128x128xbf16, #tpu.memory_space<vmem>>, vector<1x128x128xbf16>
    %62 = vector.shape_cast %61 : vector<1x128x128xbf16> to vector<128x128xbf16>
    %cst_35 = arith.constant dense<0.000000e+00> : vector<128x128xf32>
    %63 = tpu.matmul %60, %62, %cst_35 {dimension_numbers = #tpu.dot_dimension_numbers<[1], [0], [0], [1], [0, 0, 1, 1], [], []>} : vector<128x128xbf16>, vector<128x128xbf16>, vector<128x128xf32> -> vector<128x128xf32>
    %c4 = arith.constant 4 : index
    %c0_36 = arith.constant 0 : index
    %64 = vector.load %arg4[%c4, %c0_36] : memref<5x128xf32, #tpu.memory_space<vmem>>, vector<1x128xf32>
    %65 = vector.broadcast %64 : vector<1x128xf32> to vector<128x128xf32>
    %66 = arith.addf %63, %65 : vector<128x128xf32>
    %c0_37 = arith.constant 0 : index
    %c0_38 = arith.constant 0 : index
    %67 = vector.load %arg5[%c0_37, %c0_38] : memref<128x128xf32, #tpu.memory_space<vmem>>, vector<128x128xf32>
    tpu.vector_store %arg5[%c0_37, %c0_38], %66 {strides = array<i32>} : memref<128x128xf32, #tpu.memory_space<vmem>>, vector<128x128xf32>,
    return
  }
  func.func @transform_0(%arg0: i32) -> (i32, i32) {
    %c0_i32 = arith.constant 0 : i32
    %c0_i32_0 = arith.constant 0 : i32
    return %arg0, %c0_i32 : i32, i32
  }
  func.func @transform_1(%arg0: i32) -> (i32, i32) {
    %c0_i32 = arith.constant 0 : i32
    %c0_i32_0 = arith.constant 0 : i32
    %c0_i32_1 = arith.constant 0 : i32
    return %c0_i32, %c0_i32_0 : i32, i32
  }
  func.func @transform_2(%arg0: i32) -> (i32, i32, i32) {
    %c0_i32 = arith.constant 0 : i32
    %c0_i32_0 = arith.constant 0 : i32
    %c0_i32_1 = arith.constant 0 : i32
    %c0_i32_2 = arith.constant 0 : i32
    return %c0_i32, %c0_i32_0, %c0_i32_1 : i32, i32, i32
  }
  func.func @transform_3(%arg0: i32) -> (i32, i32) {
    %c0_i32 = arith.constant 0 : i32
    %c0_i32_0 = arith.constant 0 : i32
    %c0_i32_1 = arith.constant 0 : i32
    return %c0_i32, %c0_i32_0 : i32, i32
  }
  func.func @transform_4(%arg0: i32) -> (i32, i32) {
    %c0_i32 = arith.constant 0 : i32
    %c0_i32_0 = arith.constant 0 : i32
    return %arg0, %c0_i32 : i32, i32
  }
}

</mosaic_0001>

<llo_original>
// kernel: net_forward.1
$region0: #{net_forward.1}
  #allocation0 [shape = 'u32[]', space=smem, size = 0x4, offset = 0x4, fixed_abs, tag = 'smem constant byte address 0x4 - core index']
  #allocation1 [shape = 'u32[144,128]{1,0:T(1,128)}', space=vmem, size = 0x12000, scoped, tag = 'internal scratch']
  %s0 = inlined_call_operand.vmem [shape: f32[256,8], index: 0, kind: input, shape index: {}]
  %s1 = inlined_call_operand.vmem [shape: bf16[8,128], index: 1, kind: input, shape index: {}]
  %s2 = inlined_call_operand.vmem [shape: bf16[4,128,128], index: 2, kind: input, shape index: {}]
  %s3 = inlined_call_operand.vmem [shape: f32[5,128], index: 3, kind: input, shape index: {}]
  %s4 = inlined_call_operand.vmem [shape: f32[256,128], index: 4, kind: output, shape index: {}]
  %s5 = sld [smem:[#allocation0]]
  $region49: #{net_forward.1} parent=0
    _
  %s7 = ssub.s32 1, %s5
  %s8 = scalar_select 0, %s7, %s5
  loop: start=0, step=1, limit=4
  $region2: #{net_forward.1} parent=0 // loop_pre_header
    _
  $region3: #{net_forward.1} parent=0 // loop_header
    %s10 = sphi 0, %s14
    %p11 = scmp.ge.s32.totalorder %s10, 4
    %s20 = sphi 0, %s22
    %s23 = sphi 0, %s20
    %s24 = sphi 0, %s23
    %s40 = sphi 0, %s24
    %s44 = sphi 0, %s44
    %s46 = sphi 0, %s44
    %s47 = sphi 0, %s46
    %s61 = sphi 0, %s47
    %s65 = sphi 0, %s65
    %s67 = sphi 0, %s65
    %s68 = sphi 0, %s67
    %s82 = sphi 0, %s68
    %s86 = sphi 0, %s86
    %s88 = sphi 0, %s86
    %s89 = sphi 0, %s88
    %s103 = sphi 0, %s89
    %s109 = sphi 0, %s111
    %s112 = sphi 0, %s109
    %s113 = sphi 0, %s112
    %s129 = sphi 0, %s113
  $region4: #{net_forward.1} parent=0 // loop_header_branch
    %13 = sbr.rel (%p11) target = $region8
  $region5: #{net_forward.1} parent=0 // loop_body
    %s15 = ssub.s32 %s10, 1
    %s16 = ssub.s32 %s10, 2
    %s17 = sadd.s32 %s10, 1
    %s18 = ssub.s32 %s10, %s17
    %p19 = scmp.eq.s32.totalorder %s18, 0
    %s21 = sadd.s32 %s20, 1
    %s22 = scalar_select %p19, %s20, %s21
    %p25 = pneg %p19
    %p26 = scmp.eq.s32.totalorder %s10, 1
    %p27 = por %p25, %p26
    %p28 = scmp.ne.s32.totalorder %s20, %s23
    %p29 = scmp.eq.s32.totalorder %s10, 0
    %p30 = por %p28, %p29
    %p31 = scmp.ne.s32.totalorder %s20, %s23
    %p32 = scmp.eq.s32.totalorder %s15, 1
    %p33 = por %p31, %p32
    %p34 = scmp.ne.s32.totalorder %s23, %s24
    %p35 = scmp.eq.s32.totalorder %s15, 0
    %p36 = por %p34, %p35
    %p37 = scmp.ne.s32.totalorder %s23, %s24
    %p38 = scmp.eq.s32.totalorder %s16, 1
    %p39 = por %p37, %p38
    %p41 = scmp.ne.s32.totalorder %s24, %s40
    %p42 = scmp.eq.s32.totalorder %s16, 0
    %p43 = por %p41, %p42
    %s45 = sadd.s32 %s44, 1
    %p48 = scmp.eq.s32.totalorder %s10, 1
    %p49 = scmp.ne.s32.totalorder %s44, %s46
    %p50 = scmp.eq.s32.totalorder %s10, 0
    %p51 = por %p49, %p50
    %p52 = scmp.ne.s32.totalorder %s44, %s46
    %p53 = scmp.eq.s32.totalorder %s15, 1
    %p54 = por %p52, %p53
    %p55 = scmp.ne.s32.totalorder %s46, %s47
    %p56 = scmp.eq.s32.totalorder %s15, 0
    %p57 = por %p55, %p56
    %p58 = scmp.ne.s32.totalorder %s46, %s47
    %p59 = scmp.eq.s32.totalorder %s16, 1
    %p60 = por %p58, %p59
    %p62 = scmp.ne.s32.totalorder %s47, %s61
    %p63 = scmp.eq.s32.totalorder %s16, 0
    %p64 = por %p62, %p63
    %s66 = sadd.s32 %s65, 1
    %p69 = scmp.eq.s32.totalorder %s10, 1
    %p70 = scmp.ne.s32.totalorder %s65, %s67
    %p71 = scmp.eq.s32.totalorder %s10, 0
    %p72 = por %p70, %p71
    %p73 = scmp.ne.s32.totalorder %s65, %s67
    %p74 = scmp.eq.s32.totalorder %s15, 1
    %p75 = por %p73, %p74
    %p76 = scmp.ne.s32.totalorder %s67, %s68
    %p77 = scmp.eq.s32.totalorder %s15, 0
    %p78 = por %p76, %p77
    %p79 = scmp.ne.s32.totalorder %s67, %s68
    %p80 = scmp.eq.s32.totalorder %s16, 1
    %p81 = por %p79, %p80
    %p83 = scmp.ne.s32.totalorder %s68, %s82
    %p84 = scmp.eq.s32.totalorder %s16, 0
    %p85 = por %p83, %p84
    %s87 = sadd.s32 %s86, 1
    %p90 = scmp.eq.s32.totalorder %s10, 1
    %p91 = scmp.ne.s32.totalorder %s86, %s88
    %p92 = scmp.eq.s32.totalorder %s10, 0
    %p93 = por %p91, %p92
    %p94 = scmp.ne.s32.totalorder %s86, %s88
    %p95 = scmp.eq.s32.totalorder %s15, 1
    %p96 = por %p94, %p95
    %p97 = scmp.ne.s32.totalorder %s88, %s89
    %p98 = scmp.eq.s32.totalorder %s15, 0
    %p99 = por %p97, %p98
    %p100 = scmp.ne.s32.totalorder %s88, %s89
    %p101 = scmp.eq.s32.totalorder %s16, 1
    %p102 = por %p100, %p101
    %p104 = scmp.ne.s32.totalorder %s89, %s103
    %p105 = scmp.eq.s32.totalorder %s16, 0
    %p106 = por %p104, %p105
    %s107 = ssub.s32 %s10, %s17
    %p108 = scmp.eq.s32.totalorder %s107, 0
    %s110 = sadd.s32 %s109, 1
    %s111 = scalar_select %p108, %s109, %s110
    %p114 = pneg %p108
    %p115 = scmp.eq.s32.totalorder %s10, 1
    %p116 = por %p114, %p115
    %p117 = scmp.ne.s32.totalorder %s109, %s112
    %p118 = scmp.eq.s32.totalorder %s10, 0
    %p119 = por %p117, %p118
    %p120 = scmp.ne.s32.totalorder %s109, %s112
    %p121 = scmp.eq.s32.totalorder %s15, 1
    %p122 = por %p120, %p121
    %p123 = scmp.ne.s32.totalorder %s112, %s113
    %p124 = scmp.eq.s32.totalorder %s15, 0
    %p125 = por %p123, %p124
    %p126 = scmp.ne.s32.totalorder %s112, %s113
    %p127 = scmp.eq.s32.totalorder %s16, 1
    %p128 = por %p126, %p127
    %p130 = scmp.ne.s32.totalorder %s113, %s129
    %p131 = scmp.eq.s32.totalorder %s16, 0
    %p132 = por %p130, %p131
    %p133 = scmp.le.s32.totalorder 1, %s10
    %p134 = scmp.lt.s32.totalorder %s10, 3
    %p135 = pnand %p133, %p134
    %p136 = pneg %p135
    // Predicated region
    $region9: #{net_forward.1} parent=5 // pred_check
      _
    $region10: #{net_forward.1} parent=5 // pred_check_branch
      %138 = sbr.rel (%p135) target = $region12
    $region11: #{net_forward.1} parent=5 // pred_region
      %s139 = ssub.s32 %s10, 1
      // Predicated region
      $region13: #{net_forward.1} parent=11 // pred_check
        %p140 = pneg %p57
      $region14: #{net_forward.1} parent=11 // pred_check_branch
        %142 = sbr.rel (%p140) target = $region16
      $region15: #{net_forward.1} parent=11 // pred_region
        _
      $region16: #{net_forward.1} parent=11 // pred_fallthru
        _
      // Predicated region
      $region17: #{net_forward.1} parent=11 // pred_check
        %p143 = pneg %p78
      $region18: #{net_forward.1} parent=11 // pred_check_branch
        %145 = sbr.rel (%p143) target = $region20
      $region19: #{net_forward.1} parent=11 // pred_region
        _
      $region20: #{net_forward.1} parent=11 // pred_fallthru
        _
      // Predicated region
      $region21: #{net_forward.1} parent=11 // pred_check
        %p146 = pneg %p99
      $region22: #{net_forward.1} parent=11 // pred_check_branch
        %148 = sbr.rel (%p146) target = $region24
      $region23: #{net_forward.1} parent=11 // pred_region
        _
      $region24: #{net_forward.1} parent=11 // pred_fallthru
        _
    $region12: #{net_forward.1} parent=5 // pred_fallthru
      _
    %p149 = scmp.lt.s32.totalorder %s10, 2
    // Predicated region
    $region25: #{net_forward.1} parent=5 // pred_check
      %p150 = pneg %p149
    $region26: #{net_forward.1} parent=5 // pred_check_branch
      %152 = sbr.rel (%p150) target = $region28
    $region27: #{net_forward.1} parent=5 // pred_region
      // Predicated region
      $region29: #{net_forward.1} parent=27 // pred_check
        %p153 = pneg %p30
      $region30: #{net_forward.1} parent=27 // pred_check_branch
        %155 = sbr.rel (%p153) target = $region32
      $region31: #{net_forward.1} parent=27 // pred_region
        %s156 = smul.u32 16, %s10
        %p157 = scmp.lt.s32.totalorder %s156, 31
        %s158 = scalar_select %p157, %s156, 31
        %s159 = smul.addr %s158, 8
        %s160 = scalar_lea.vmem %s0, %s159
        %s161 = smul.u32 16, %s10
      $region32: #{net_forward.1} parent=27 // pred_fallthru
        _
    $region28: #{net_forward.1} parent=5 // pred_fallthru
      _
    %p162 = scmp.le.s32.totalorder 1, %s10
    %p163 = scmp.lt.s32.totalorder %s10, 3
    %p164 = pnand %p162, %p163
    %p165 = pneg %p164
    // Predicated region
    $region33: #{net_forward.1} parent=5 // pred_check
      _
    $region34: #{net_forward.1} parent=5 // pred_check_branch
      %167 = sbr.rel (%p164) target = $region36
    $region35: #{net_forward.1} parent=5 // pred_region
      %s168 = ssub.s32 %s10, 1
      %s169 = smul.u32 16, %s15
      %p170 = scmp.lt.s32.totalorder %s169, 31
      %s171 = scalar_select %p170, %s169, 31
      %s172 = smul.addr %s171, 8
      %s173 = scalar_lea.vmem %s0, %s172
      %p174 = pneg %p36
      %p175 = pneg %p33
      %p176 = pneg %p57
      %p177 = pneg %p54
      %p178 = pneg %p78
      %p179 = pneg %p75
      %p180 = pneg %p99
      %p181 = pneg %p96
      %p182 = pneg %p125
      %p183 = pneg %p122
      %s184 = smul.u32 16, %s15
      %p185 = scmp.lt.s32.totalorder %s184, 31
      %s186 = scalar_select %p185, %s184, 31
      %s187 = smul.addr %s186, 8
      %s188 = scalar_lea.vmem %s4, %s187
      %s189 = smul.u32 16, %s15
      %p190 = scmp.lt.s32.totalorder %s189, 31
      %s191 = scalar_select %p190, %s189, 31
      %s192 = smul.addr %s191, 8
      %s193 = scalar_lea.vmem %s0, %s192
      %s194 = smul.u32 16, %s15
      %s195 = smul.u32 16, %s15
      %p196 = scmp.lt.s32.totalorder %s195, 31
      %s197 = scalar_select %p196, %s195, 31
      %s198 = smul.addr %s197, 8
      %s199 = scalar_lea.vmem %s4, %s198
      %s200 = smul.u32 16, %s15
      %v202 = vld [vmem:[%s193] sm:$0xff]
      %v203 = vld [vmem:[%s193 + $0x8] sm:$0xff]
      %v204 = vld [vmem:[%s193 + $0x10] sm:$0xff]
      %v205 = vld [vmem:[%s193 + $0x18] sm:$0xff]
      %v206 = vld [vmem:[%s193 + $0x20] sm:$0xff]
      %v207 = vld [vmem:[%s193 + $0x28] sm:$0xff]
      %v208 = vld [vmem:[%s193 + $0x30] sm:$0xff]
      %v209 = vld [vmem:[%s193 + $0x38] sm:$0xff]
      %v210 = vld [vmem:[%s193 + $0x40] sm:$0xff]
      %v211 = vld [vmem:[%s193 + $0x48] sm:$0xff]
      %v212 = vld [vmem:[%s193 + $0x50] sm:$0xff]
      %v213 = vld [vmem:[%s193 + $0x58] sm:$0xff]
      %v214 = vld [vmem:[%s193 + $0x60] sm:$0xff]
      %v215 = vld [vmem:[%s193 + $0x68] sm:$0xff]
      %v216 = vld [vmem:[%s193 + $0x70] sm:$0xff]
      %v217 = vld [vmem:[%s193 + $0x78] sm:$0xff]
      %v218 = vpack.c.bf16 %v203, %v202
      %v219 = vpack.c.bf16 %v205, %v204
      %v220 = vpack.c.bf16 %v207, %v206
      %v221 = vpack.c.bf16 %v209, %v208
      %v222 = vpack.c.bf16 %v211, %v210
      %v223 = vpack.c.bf16 %v213, %v212
      %v224 = vpack.c.bf16 %v215, %v214
      %v225 = vpack.c.bf16 %v217, %v216
      %v226 = vld [vmem:[%s1] sm:$0xf]
      %v227 = vld [vmem:[%s3] sm:$0x1]
      %v228 = vlaneseq
      %v229 = vshrl.u32 %v228, 7
      %v230 = vsub.s32 0, %v229
      %v231 = vrot.slane %v227, %v230
      %vm232 = vcmask 64512
      %v234 = vsel %vm232, %v218, 0
      %v237 = vsel %vm232, %v219, 0
      %v240 = vsel %vm232, %v220, 0
      %v243 = vsel %vm232, %v221, 0
      %v246 = vsel %vm232, %v222, 0
      %v249 = vsel %vm232, %v223, 0
      %v252 = vsel %vm232, %v224, 0
      %v255 = vsel %vm232, %v225, 0
      %vm257 = vcmask 1043456
      %v259 = vsel %vm257, %v226, 0
      %261 = vmatprep.subr.bf16.mxu0 0
      %262 = vmatpush1.bf16.msra.mxu0 0
      %263 = vmatprep.subr.bf16.mxu0 0
      %264 = vmatpush1.bf16.msra.mxu0 0
      %265 = vmatprep.subr.bf16.mxu0 0
      %266 = vmatpush1.bf16.msra.mxu0 0
      %267 = vmatprep.subr.bf16.mxu0 0
      %268 = vmatpush1.bf16.msra.mxu0 0
      %269 = vmatprep.subr.bf16.mxu0 0
      %270 = vmatpush1.bf16.msra.mxu0 0
      %271 = vmatprep.subr.bf16.mxu0 0
      %272 = vmatpush1.bf16.msra.mxu0 0
      %273 = vmatprep.subr.bf16.mxu0 0
      %274 = vmatpush1.bf16.msra.mxu0 0
      %275 = vmatprep.subr.bf16.mxu0 0
      %276 = vmatpush1.bf16.msra.mxu0 %v259
      %277 = vmatprep.subr.bf16.mxu0 0
      %278 = vmatpush2.bf16.msra.mxu0 0
      %279 = vmatprep.subr.bf16.mxu0 0
      %280 = vmatpush2.bf16.msra.mxu0 0
      %281 = vmatprep.subr.bf16.mxu0 0
      %282 = vmatpush2.bf16.msra.mxu0 0
      %283 = vmatprep.subr.bf16.mxu0 0
      %284 = vmatpush2.bf16.msra.mxu0 0
      %285 = vmatprep.subr.bf16.mxu0 0
      %286 = vmatpush2.bf16.msra.mxu0 0
      %287 = vmatprep.subr.bf16.mxu0 0
      %288 = vmatpush2.bf16.msra.mxu0 0
      %289 = vmatprep.subr.bf16.mxu0 0
      %290 = vmatpush2.bf16.msra.mxu0 0
      %291 = vmatprep.subr.bf16.mxu0 0
      %292 = vmatpush2.bf16.msra.mxu0 0
      %293 = vmatprep.mubr.bf16.mxu0 0
      %294 = vmatmul.mubr.bf16.gmra.mxu0 %v234
      %v295 = vpop.f32.mrf.mxu0
      %v296 = vadd.f32 %v231, %v295
      %v297 = vpop.f32.mrf.mxu0
      %v298 = vpop.f32.mrf.mxu0
      %v299 = vadd.f32 %v231, %v298
      %v300 = vpop.f32.mrf.mxu0
      %301 = vmatprep.mubr.bf16.mxu0 0
      %302 = vmatmul.mubr.bf16.gmra.mxu0 %v237
      %v303 = vpop.f32.mrf.mxu0
      %v304 = vadd.f32 %v231, %v303
      %v305 = vpop.f32.mrf.mxu0
      %v306 = vpop.f32.mrf.mxu0
      %v307 = vadd.f32 %v231, %v306
      %v308 = vpop.f32.mrf.mxu0
      %309 = vmatprep.mubr.bf16.mxu0 0
      %310 = vmatmul.mubr.bf16.gmra.mxu0 %v240
      %v311 = vpop.f32.mrf.mxu0
      %v312 = vadd.f32 %v231, %v311
      %v313 = vpop.f32.mrf.mxu0
      %v314 = vpop.f32.mrf.mxu0
      %v315 = vadd.f32 %v231, %v314
      %v316 = vpop.f32.mrf.mxu0
      %317 = vmatprep.mubr.bf16.mxu0 0
      %318 = vmatmul.mubr.bf16.gmra.mxu0 %v243
      %v319 = vpop.f32.mrf.mxu0
      %v320 = vadd.f32 %v231, %v319
      %v321 = vpop.f32.mrf.mxu0
      %v322 = vpop.f32.mrf.mxu0
      %v323 = vadd.f32 %v231, %v322
      %v324 = vpop.f32.mrf.mxu0
      %325 = vmatprep.mubr.bf16.mxu0 0
      %326 = vmatmul.mubr.bf16.gmra.mxu0 %v246
      %v327 = vpop.f32.mrf.mxu0
      %v328 = vadd.f32 %v231, %v327
      %v329 = vpop.f32.mrf.mxu0
      %v330 = vpop.f32.mrf.mxu0
      %v331 = vadd.f32 %v231, %v330
      %v332 = vpop.f32.mrf.mxu0
      %333 = vmatprep.mubr.bf16.mxu0 0
      %334 = vmatmul.mubr.bf16.gmra.mxu0 %v249
      %v335 = vpop.f32.mrf.mxu0
      %v336 = vadd.f32 %v231, %v335
      %v337 = vpop.f32.mrf.mxu0
      %v338 = vpop.f32.mrf.mxu0
      %v339 = vadd.f32 %v231, %v338
      %v340 = vpop.f32.mrf.mxu0
      %341 = vmatprep.mubr.bf16.mxu0 0
      %342 = vmatmul.mubr.bf16.gmra.mxu0 %v252
      %v343 = vpop.f32.mrf.mxu0
      %v344 = vadd.f32 %v231, %v343
      %v345 = vpop.f32.mrf.mxu0
      %v346 = vpop.f32.mrf.mxu0
      %v347 = vadd.f32 %v231, %v346
      %v348 = vpop.f32.mrf.mxu0
      %349 = vmatprep.mubr.bf16.mxu0 0
      %350 = vmatmul.mubr.bf16.gmra.mxu0 %v255
      %v351 = vpop.f32.mrf.mxu0
      %v352 = vadd.f32 %v231, %v351
      %v353 = vpop.f32.mrf.mxu0
      %v354 = vpop.f32.mrf.mxu0
      %v355 = vadd.f32 %v231, %v354
      %v356 = vpop.f32.mrf.mxu0
      %357 = vdwg.mxu0
      %v358 = vmul.f32 %v296, 0.5
      %v359 = vmul.f32 %v299, 0.5
      %v360 = vmul.f32 %v304, 0.5
      %v361 = vmul.f32 %v307, 0.5
      %v362 = vmul.f32 %v312, 0.5
      %v363 = vmul.f32 %v315, 0.5
      %v364 = vmul.f32 %v320, 0.5
      %v365 = vmul.f32 %v323, 0.5
      %v366 = vmul.f32 %v328, 0.5
      %v367 = vmul.f32 %v331, 0.5
      %v368 = vmul.f32 %v336, 0.5
      %v369 = vmul.f32 %v339, 0.5
      %v370 = vmul.f32 %v344, 0.5
      %v371 = vmul.f32 %v347, 0.5
      %v372 = vmul.f32 %v352, 0.5
      %v373 = vmul.f32 %v355, 0.5
      %v374 = vtanh.pop %v358
      %v375 = vtanh.pop %v359
      %v376 = vtanh.pop %v360
      %v377 = vtanh.pop %v361
      %v378 = vtanh.pop %v362
      %v379 = vtanh.pop %v363
      %v380 = vtanh.pop %v364
      %v381 = vtanh.pop %v365
      %v382 = vtanh.pop %v366
      %v383 = vtanh.pop %v367
      %v384 = vtanh.pop %v368
      %v385 = vtanh.pop %v369
      %v386 = vtanh.pop %v370
      %v387 = vtanh.pop %v371
      %v388 = vtanh.pop %v372
      %v389 = vtanh.pop %v373
      %v390 = vadd.f32 %v374, 1.0
      %v391 = vadd.f32 %v375, 1.0
      %v392 = vadd.f32 %v376, 1.0
      %v393 = vadd.f32 %v377, 1.0
      %v394 = vadd.f32 %v378, 1.0
      %v395 = vadd.f32 %v379, 1.0
      %v396 = vadd.f32 %v380, 1.0
      %v397 = vadd.f32 %v381, 1.0
      %v398 = vadd.f32 %v382, 1.0
      %v399 = vadd.f32 %v383, 1.0
      %v400 = vadd.f32 %v384, 1.0
      %v401 = vadd.f32 %v385, 1.0
      %v402 = vadd.f32 %v386, 1.0
      %v403 = vadd.f32 %v387, 1.0
      %v404 = vadd.f32 %v388, 1.0
      %v405 = vadd.f32 %v389, 1.0
      %v406 = vmul.f32 %v358, %v390
      %v407 = vmul.f32 %v359, %v391
      %v408 = vmul.f32 %v360, %v392
      %v409 = vmul.f32 %v361, %v393
      %v410 = vmul.f32 %v362, %v394
      %v411 = vmul.f32 %v363, %v395
      %v412 = vmul.f32 %v364, %v396
      %v413 = vmul.f32 %v365, %v397
      %v414 = vmul.f32 %v366, %v398
      %v415 = vmul.f32 %v367, %v399
      %v416 = vmul.f32 %v368, %v400
      %v417 = vmul.f32 %v369, %v401
      %v418 = vmul.f32 %v370, %v402
      %v419 = vmul.f32 %v371, %v403
      %v420 = vmul.f32 %v372, %v404
      %v421 = vmul.f32 %v373, %v405
      %v422 = vpack.c.bf16 %v407, %v406
      %v423 = vpack.c.bf16 %v409, %v408
      %v424 = vpack.c.bf16 %v411, %v410
      %v425 = vpack.c.bf16 %v413, %v412
      %v426 = vpack.c.bf16 %v415, %v414
      %v427 = vpack.c.bf16 %v417, %v416
      %v428 = vpack.c.bf16 %v419, %v418
      %v429 = vpack.c.bf16 %v421, %v420
      %v430 = vld [vmem:[%s2] sm:$0xf]
      %v431 = vld [vmem:[%s2 + $0x4] sm:$0xf]
      %v432 = vld [vmem:[%s2 + $0x8] sm:$0xf]
      %v433 = vld [vmem:[%s2 + $0xc] sm:$0xf]
      %v434 = vld [vmem:[%s2 + $0x10] sm:$0xf]
      %v435 = vld [vmem:[%s2 + $0x14] sm:$0xf]
      %v436 = vld [vmem:[%s2 + $0x18] sm:$0xf]
      %v437 = vld [vmem:[%s2 + $0x1c] sm:$0xf]
      %v438 = vld [vmem:[%s2 + $0x20] sm:$0xf]
      %v439 = vld [vmem:[%s2 + $0x24] sm:$0xf]
      %v440 = vld [vmem:[%s2 + $0x28] sm:$0xf]
      %v441 = vld [vmem:[%s2 + $0x2c] sm:$0xf]
      %v442 = vld [vmem:[%s2 + $0x30] sm:$0xf]
      %v443 = vld [vmem:[%s2 + $0x34] sm:$0xf]
      %v444 = vld [vmem:[%s2 + $0x38] sm:$0xf]
      %v445 = vld [vmem:[%s2 + $0x3c] sm:$0xf]
      %v446 = vld [vmem:[%s3 + $0x1] sm:$0x1]
      %v447 = vlaneseq
      %v448 = vshrl.u32 %v447, 7
      %v449 = vsub.s32 0, %v448
      %v450 = vrot.slane %v446, %v449
      %v467 = vunpack.c.l.b16 %v430
      %v468 = vunpack.c.l.b16 %v431
      %v469 = vunpack.c.l.b16 %v432
      %v470 = vunpack.c.l.b16 %v433
      %v471 = vunpack.c.l.b16 %v434
      %v472 = vunpack.c.l.b16 %v435
      %v473 = vunpack.c.l.b16 %v436
      %v474 = vunpack.c.l.b16 %v437
      %v475 = vunpack.c.l.b16 %v438
      %v476 = vunpack.c.l.b16 %v439
      %v477 = vunpack.c.l.b16 %v440
      %v478 = vunpack.c.l.b16 %v441
      %v479 = vunpack.c.l.b16 %v442
      %v480 = vunpack.c.l.b16 %v443
      %v481 = vunpack.c.l.b16 %v444
      %v482 = vunpack.c.l.b16 %v445
      %v483 = vpack.c.b16 %v468, %v467
      %v484 = vpack.c.b16 %v470, %v469
      %v485 = vpack.c.b16 %v472, %v471
      %v486 = vpack.c.b16 %v474, %v473
      %v487 = vpack.c.b16 %v476, %v475
      %v488 = vpack.c.b16 %v478, %v477
      %v489 = vpack.c.b16 %v480, %v479
      %v490 = vpack.c.b16 %v482, %v481
      %499 = vmatprep.subr.bf16.mxu0 0
      %500 = vmatpush1.bf16.msra.mxu0 %v490
      %501 = vmatprep.subr.bf16.mxu0 0
      %502 = vmatpush1.bf16.msra.mxu0 %v489
      %503 = vmatprep.subr.bf16.mxu0 0
      %504 = vmatpush1.bf16.msra.mxu0 %v488
      %505 = vmatprep.subr.bf16.mxu0 0
      %506 = vmatpush1.bf16.msra.mxu0 %v487
      %507 = vmatprep.subr.bf16.mxu0 0
      %508 = vmatpush1.bf16.msra.mxu0 %v486
      %509 = vmatprep.subr.bf16.mxu0 0
      %510 = vmatpush1.bf16.msra.mxu0 %v485
      %511 = vmatprep.subr.bf16.mxu0 0
      %512 = vmatpush1.bf16.msra.mxu0 %v484
      %513 = vmatprep.subr.bf16.mxu0 0
      %514 = vmatpush1.bf16.msra.mxu0 %v483
      %515 = vmatprep.subr.bf16.mxu0 0
      %516 = vmatpush2.bf16.msra.mxu0 0
      %517 = vmatprep.subr.bf16.mxu0 0
      %518 = vmatpush2.bf16.msra.mxu0 0
      %519 = vmatprep.subr.bf16.mxu0 0
      %520 = vmatpush2.bf16.msra.mxu0 0
      %521 = vmatprep.subr.bf16.mxu0 0
      %522 = vmatpush2.bf16.msra.mxu0 0
      %523 = vmatprep.subr.bf16.mxu0 0
      %524 = vmatpush2.bf16.msra.mxu0 0
      %525 = vmatprep.subr.bf16.mxu0 0
      %526 = vmatpush2.bf16.msra.mxu0 0
      %527 = vmatprep.subr.bf16.mxu0 0
      %528 = vmatpush2.bf16.msra.mxu0 0
      %529 = vmatprep.subr.bf16.mxu0 0
      %530 = vmatpush2.bf16.msra.mxu0 0
      %531 = vmatprep.mubr.bf16.mxu0 0
      %532 = vmatmul.mubr.bf16.gmra.mxu0 %v422
      %v533 = vpop.f32.mrf.mxu0
      %v534 = vadd.f32 %v450, %v533
      %v535 = vpop.f32.mrf.mxu0
      %v536 = vpop.f32.mrf.mxu0
      %v537 = vadd.f32 %v450, %v536
      %v538 = vpop.f32.mrf.mxu0
      %539 = vmatprep.mubr.bf16.mxu0 0
      %540 = vmatmul.mubr.bf16.gmra.mxu0 %v423
      %v541 = vpop.f32.mrf.mxu0
      %v542 = vadd.f32 %v450, %v541
      %v543 = vpop.f32.mrf.mxu0
      %v544 = vpop.f32.mrf.mxu0
      %v545 = vadd.f32 %v450, %v544
      %v546 = vpop.f32.mrf.mxu0
      %547 = vmatprep.mubr.bf16.mxu0 0
      %548 = vmatmul.mubr.bf16.gmra.mxu0 %v424
      %v549 = vpop.f32.mrf.mxu0
      %v550 = vadd.f32 %v450, %v549
      %v551 = vpop.f32.mrf.mxu0
      %v552 = vpop.f32.mrf.mxu0
      %v553 = vadd.f32 %v450, %v552
      %v554 = vpop.f32.mrf.mxu0
      %555 = vmatprep.mubr.bf16.mxu0 0
      %556 = vmatmul.mubr.bf16.gmra.mxu0 %v425
      %v557 = vpop.f32.mrf.mxu0
      %v558 = vadd.f32 %v450, %v557
      %v559 = vpop.f32.mrf.mxu0
      %v560 = vpop.f32.mrf.mxu0
      %v561 = vadd.f32 %v450, %v560
      %v562 = vpop.f32.mrf.mxu0
      %563 = vmatprep.mubr.bf16.mxu0 0
      %564 = vmatmul.mubr.bf16.gmra.mxu0 %v426
      %v565 = vpop.f32.mrf.mxu0
      %v566 = vadd.f32 %v450, %v565
      %v567 = vpop.f32.mrf.mxu0
      %v568 = vpop.f32.mrf.mxu0
      %v569 = vadd.f32 %v450, %v568
      %v570 = vpop.f32.mrf.mxu0
      %571 = vmatprep.mubr.bf16.mxu0 0
      %572 = vmatmul.mubr.bf16.gmra.mxu0 %v427
      %v573 = vpop.f32.mrf.mxu0
      %v574 = vadd.f32 %v450, %v573
      %v575 = vpop.f32.mrf.mxu0
      %v576 = vpop.f32.mrf.mxu0
      %v577 = vadd.f32 %v450, %v576
      %v578 = vpop.f32.mrf.mxu0
      %579 = vmatprep.mubr.bf16.mxu0 0
      %580 = vmatmul.mubr.bf16.gmra.mxu0 %v428
      %v581 = vpop.f32.mrf.mxu0
      %v582 = vadd.f32 %v450, %v581
      %v583 = vpop.f32.mrf.mxu0
      %v584 = vpop.f32.mrf.mxu0
      %v585 = vadd.f32 %v450, %v584
      %v586 = vpop.f32.mrf.mxu0
      %587 = vmatprep.mubr.bf16.mxu0 0
      %588 = vmatmul.mubr.bf16.gmra.mxu0 %v429
      %v589 = vpop.f32.mrf.mxu0
      %v590 = vadd.f32 %v450, %v589
      %v591 = vpop.f32.mrf.mxu0
      %v592 = vpop.f32.mrf.mxu0
      %v593 = vadd.f32 %v450, %v592
      %v594 = vpop.f32.mrf.mxu0
      %595 = vdwg.mxu0
      %v596 = vmul.f32 %v534, 0.5
      %v597 = vmul.f32 %v537, 0.5
      %v598 = vmul.f32 %v542, 0.5
      %v599 = vmul.f32 %v545, 0.5
      %v600 = vmul.f32 %v550, 0.5
      %v601 = vmul.f32 %v553, 0.5
      %v602 = vmul.f32 %v558, 0.5
      %v603 = vmul.f32 %v561, 0.5
      %v604 = vmul.f32 %v566, 0.5
      %v605 = vmul.f32 %v569, 0.5
      %v606 = vmul.f32 %v574, 0.5
      %v607 = vmul.f32 %v577, 0.5
      %v608 = vmul.f32 %v582, 0.5
      %v609 = vmul.f32 %v585, 0.5
      %v610 = vmul.f32 %v590, 0.5
      %v611 = vmul.f32 %v593, 0.5
      %v612 = vtanh.pop %v596
      %v613 = vtanh.pop %v597
      %v614 = vtanh.pop %v598
      %v615 = vtanh.pop %v599
      %v616 = vtanh.pop %v600
      %v617 = vtanh.pop %v601
      %v618 = vtanh.pop %v602
      %v619 = vtanh.pop %v603
      %v620 = vtanh.pop %v604
      %v621 = vtanh.pop %v605
      %v622 = vtanh.pop %v606
      %v623 = vtanh.pop %v607
      %v624 = vtanh.pop %v608
      %v625 = vtanh.pop %v609
      %v626 = vtanh.pop %v610
      %v627 = vtanh.pop %v611
      %v628 = vadd.f32 %v612, 1.0
      %v629 = vadd.f32 %v613, 1.0
      %v630 = vadd.f32 %v614, 1.0
      %v631 = vadd.f32 %v615, 1.0
      %v632 = vadd.f32 %v616, 1.0
      %v633 = vadd.f32 %v617, 1.0
      %v634 = vadd.f32 %v618, 1.0
      %v635 = vadd.f32 %v619, 1.0
      %v636 = vadd.f32 %v620, 1.0
      %v637 = vadd.f32 %v621, 1.0
      %v638 = vadd.f32 %v622, 1.0
      %v639 = vadd.f32 %v623, 1.0
      %v640 = vadd.f32 %v624, 1.0
      %v641 = vadd.f32 %v625, 1.0
      %v642 = vadd.f32 %v626, 1.0
      %v643 = vadd.f32 %v627, 1.0
      %v644 = vmul.f32 %v596, %v628
      %v645 = vmul.f32 %v597, %v629
      %v646 = vmul.f32 %v598, %v630
      %v647 = vmul.f32 %v599, %v631
      %v648 = vmul.f32 %v600, %v632
      %v649 = vmul.f32 %v601, %v633
      %v650 = vmul.f32 %v602, %v634
      %v651 = vmul.f32 %v603, %v635
      %v652 = vmul.f32 %v604, %v636
      %v653 = vmul.f32 %v605, %v637
      %v654 = vmul.f32 %v606, %v638
      %v655 = vmul.f32 %v607, %v639
      %v656 = vmul.f32 %v608, %v640
      %v657 = vmul.f32 %v609, %v641
      %v658 = vmul.f32 %v610, %v642
      %v659 = vmul.f32 %v611, %v643
      %v660 = vpack.c.bf16 %v645, %v644
      %v661 = vpack.c.bf16 %v647, %v646
      %v662 = vpack.c.bf16 %v649, %v648
      %v663 = vpack.c.bf16 %v651, %v650
      %v664 = vpack.c.bf16 %v653, %v652
      %v665 = vpack.c.bf16 %v655, %v654
      %v666 = vpack.c.bf16 %v657, %v656
      %v667 = vpack.c.bf16 %v659, %v658
      %s668 = scalar_lea.vmem %s2, 64
      %v669 = vld [vmem:[%s668] sm:$0xf]
      %v670 = vld [vmem:[%s668 + $0x4] sm:$0xf]
      %v671 = vld [vmem:[%s668 + $0x8] sm:$0xf]
      %v672 = vld [vmem:[%s668 + $0xc] sm:$0xf]
      %v673 = vld [vmem:[%s668 + $0x10] sm:$0xf]
      %v674 = vld [vmem:[%s668 + $0x14] sm:$0xf]
      %v675 = vld [vmem:[%s668 + $0x18] sm:$0xf]
      %v676 = vld [vmem:[%s668 + $0x1c] sm:$0xf]
      %v677 = vld [vmem:[%s668 + $0x20] sm:$0xf]
      %v678 = vld [vmem:[%s668 + $0x24] sm:$0xf]
      %v679 = vld [vmem:[%s668 + $0x28] sm:$0xf]
      %v680 = vld [vmem:[%s668 + $0x2c] sm:$0xf]
      %v681 = vld [vmem:[%s668 + $0x30] sm:$0xf]
      %v682 = vld [vmem:[%s668 + $0x34] sm:$0xf]
      %v683 = vld [vmem:[%s668 + $0x38] sm:$0xf]
      %v684 = vld [vmem:[%s668 + $0x3c] sm:$0xf]
      %v685 = vld [vmem:[%s3 + $0x2] sm:$0x1]
      %v686 = vlaneseq
      %v687 = vshrl.u32 %v686, 7
      %v688 = vsub.s32 0, %v687
      %v689 = vrot.slane %v685, %v688
      %v706 = vunpack.c.l.b16 %v669
      %v707 = vunpack.c.l.b16 %v670
      %v708 = vunpack.c.l.b16 %v671
      %v709 = vunpack.c.l.b16 %v672
      %v710 = vunpack.c.l.b16 %v673
      %v711 = vunpack.c.l.b16 %v674
      %v712 = vunpack.c.l.b16 %v675
      %v713 = vunpack.c.l.b16 %v676
      %v714 = vunpack.c.l.b16 %v677
      %v715 = vunpack.c.l.b16 %v678
      %v716 = vunpack.c.l.b16 %v679
      %v717 = vunpack.c.l.b16 %v680
      %v718 = vunpack.c.l.b16 %v681
      %v719 = vunpack.c.l.b16 %v682
      %v720 = vunpack.c.l.b16 %v683
      %v721 = vunpack.c.l.b16 %v684
      %v722 = vpack.c.b16 %v707, %v706
      %v723 = vpack.c.b16 %v709, %v708
      %v724 = vpack.c.b16 %v711, %v710
      %v725 = vpack.c.b16 %v713, %v712
      %v726 = vpack.c.b16 %v715, %v714
      %v727 = vpack.c.b16 %v717, %v716
      %v728 = vpack.c.b16 %v719, %v718
      %v729 = vpack.c.b16 %v721, %v720
      %738 = vmatprep.subr.bf16.mxu0 0
      %739 = vmatpush1.bf16.msra.mxu0 %v729
      %740 = vmatprep.subr.bf16.mxu0 0
      %741 = vmatpush1.bf16.msra.mxu0 %v728
      %742 = vmatprep.subr.bf16.mxu0 0
      %743 = vmatpush1.bf16.msra.mxu0 %v727
      %744 = vmatprep.subr.bf16.mxu0 0
      %745 = vmatpush1.bf16.msra.mxu0 %v726
      %746 = vmatprep.subr.bf16.mxu0 0
      %747 = vmatpush1.bf16.msra.mxu0 %v725
      %748 = vmatprep.subr.bf16.mxu0 0
      %749 = vmatpush1.bf16.msra.mxu0 %v724
      %750 = vmatprep.subr.bf16.mxu0 0
      %751 = vmatpush1.bf16.msra.mxu0 %v723
      %752 = vmatprep.subr.bf16.mxu0 0
      %753 = vmatpush1.bf16.msra.mxu0 %v722
      %754 = vmatprep.subr.bf16.mxu0 0
      %755 = vmatpush2.bf16.msra.mxu0 0
      %756 = vmatprep.subr.bf16.mxu0 0
      %757 = vmatpush2.bf16.msra.mxu0 0
      %758 = vmatprep.subr.bf16.mxu0 0
      %759 = vmatpush2.bf16.msra.mxu0 0
      %760 = vmatprep.subr.bf16.mxu0 0
      %761 = vmatpush2.bf16.msra.mxu0 0
      %762 = vmatprep.subr.bf16.mxu0 0
      %763 = vmatpush2.bf16.msra.mxu0 0
      %764 = vmatprep.subr.bf16.mxu0 0
      %765 = vmatpush2.bf16.msra.mxu0 0
      %766 = vmatprep.subr.bf16.mxu0 0
      %767 = vmatpush2.bf16.msra.mxu0 0
      %768 = vmatprep.subr.bf16.mxu0 0
      %769 = vmatpush2.bf16.msra.mxu0 0
      %770 = vmatprep.mubr.bf16.mxu0 0
      %771 = vmatmul.mubr.bf16.gmra.mxu0 %v660
      %v772 = vpop.f32.mrf.mxu0
      %v773 = vadd.f32 %v689, %v772
      %v774 = vpop.f32.mrf.mxu0
      %v775 = vpop.f32.mrf.mxu0
      %v776 = vadd.f32 %v689, %v775
      %v777 = vpop.f32.mrf.mxu0
      %778 = vmatprep.mubr.bf16.mxu0 0
      %779 = vmatmul.mubr.bf16.gmra.mxu0 %v661
      %v780 = vpop.f32.mrf.mxu0
      %v781 = vadd.f32 %v689, %v780
      %v782 = vpop.f32.mrf.mxu0
      %v783 = vpop.f32.mrf.mxu0
      %v784 = vadd.f32 %v689, %v783
      %v785 = vpop.f32.mrf.mxu0
      %786 = vmatprep.mubr.bf16.mxu0 0
      %787 = vmatmul.mubr.bf16.gmra.mxu0 %v662
      %v788 = vpop.f32.mrf.mxu0
      %v789 = vadd.f32 %v689, %v788
      %v790 = vpop.f32.mrf.mxu0
      %v791 = vpop.f32.mrf.mxu0
      %v792 = vadd.f32 %v689, %v791
      %v793 = vpop.f32.mrf.mxu0
      %794 = vmatprep.mubr.bf16.mxu0 0
      %795 = vmatmul.mubr.bf16.gmra.mxu0 %v663
      %v796 = vpop.f32.mrf.mxu0
      %v797 = vadd.f32 %v689, %v796
      %v798 = vpop.f32.mrf.mxu0
      %v799 = vpop.f32.mrf.mxu0
      %v800 = vadd.f32 %v689, %v799
      %v801 = vpop.f32.mrf.mxu0
      %802 = vmatprep.mubr.bf16.mxu0 0
      %803 = vmatmul.mubr.bf16.gmra.mxu0 %v664
      %v804 = vpop.f32.mrf.mxu0
      %v805 = vadd.f32 %v689, %v804
      %v806 = vpop.f32.mrf.mxu0
      %v807 = vpop.f32.mrf.mxu0
      %v808 = vadd.f32 %v689, %v807
      %v809 = vpop.f32.mrf.mxu0
      %810 = vmatprep.mubr.bf16.mxu0 0
      %811 = vmatmul.mubr.bf16.gmra.mxu0 %v665
      %v812 = vpop.f32.mrf.mxu0
      %v813 = vadd.f32 %v689, %v812
      %v814 = vpop.f32.mrf.mxu0
      %v815 = vpop.f32.mrf.mxu0
      %v816 = vadd.f32 %v689, %v815
      %v817 = vpop.f32.mrf.mxu0
      %818 = vmatprep.mubr.bf16.mxu0 0
      %819 = vmatmul.mubr.bf16.gmra.mxu0 %v666
      %v820 = vpop.f32.mrf.mxu0
      %v821 = vadd.f32 %v689, %v820
      %v822 = vpop.f32.mrf.mxu0
      %v823 = vpop.f32.mrf.mxu0
      %v824 = vadd.f32 %v689, %v823
      %v825 = vpop.f32.mrf.mxu0
      %826 = vmatprep.mubr.bf16.mxu0 0
      %827 = vmatmul.mubr.bf16.gmra.mxu0 %v667
      %v828 = vpop.f32.mrf.mxu0
      %v829 = vadd.f32 %v689, %v828
      %v830 = vpop.f32.mrf.mxu0
      %v831 = vpop.f32.mrf.mxu0
      %v832 = vadd.f32 %v689, %v831
      %v833 = vpop.f32.mrf.mxu0
      %834 = vdwg.mxu0
      %v835 = vmul.f32 %v773, 0.5
      %v836 = vmul.f32 %v776, 0.5
      %v837 = vmul.f32 %v781, 0.5
      %v838 = vmul.f32 %v784, 0.5
      %v839 = vmul.f32 %v789, 0.5
      %v840 = vmul.f32 %v792, 0.5
      %v841 = vmul.f32 %v797, 0.5
      %v842 = vmul.f32 %v800, 0.5
      %v843 = vmul.f32 %v805, 0.5
      %v844 = vmul.f32 %v808, 0.5
      %v845 = vmul.f32 %v813, 0.5
      %v846 = vmul.f32 %v816, 0.5
      %v847 = vmul.f32 %v821, 0.5
      %v848 = vmul.f32 %v824, 0.5
      %v849 = vmul.f32 %v829, 0.5
      %v850 = vmul.f32 %v832, 0.5
      %v851 = vtanh.pop %v835
      %v852 = vtanh.pop %v836
      %v853 = vtanh.pop %v837
      %v854 = vtanh.pop %v838
      %v855 = vtanh.pop %v839
      %v856 = vtanh.pop %v840
      %v857 = vtanh.pop %v841
      %v858 = vtanh.pop %v842
      %v859 = vtanh.pop %v843
      %v860 = vtanh.pop %v844
      %v861 = vtanh.pop %v845
      %v862 = vtanh.pop %v846
      %v863 = vtanh.pop %v847
      %v864 = vtanh.pop %v848
      %v865 = vtanh.pop %v849
      %v866 = vtanh.pop %v850
      %v867 = vadd.f32 %v851, 1.0
      %v868 = vadd.f32 %v852, 1.0
      %v869 = vadd.f32 %v853, 1.0
      %v870 = vadd.f32 %v854, 1.0
      %v871 = vadd.f32 %v855, 1.0
      %v872 = vadd.f32 %v856, 1.0
      %v873 = vadd.f32 %v857, 1.0
      %v874 = vadd.f32 %v858, 1.0
      %v875 = vadd.f32 %v859, 1.0
      %v876 = vadd.f32 %v860, 1.0
      %v877 = vadd.f32 %v861, 1.0
      %v878 = vadd.f32 %v862, 1.0
      %v879 = vadd.f32 %v863, 1.0
      %v880 = vadd.f32 %v864, 1.0
      %v881 = vadd.f32 %v865, 1.0
      %v882 = vadd.f32 %v866, 1.0
      %v883 = vmul.f32 %v835, %v867
      %v884 = vmul.f32 %v836, %v868
      %v885 = vmul.f32 %v837, %v869
      %v886 = vmul.f32 %v838, %v870
      %v887 = vmul.f32 %v839, %v871
      %v888 = vmul.f32 %v840, %v872
      %v889 = vmul.f32 %v841, %v873
      %v890 = vmul.f32 %v842, %v874
      %v891 = vmul.f32 %v843, %v875
      %v892 = vmul.f32 %v844, %v876
      %v893 = vmul.f32 %v845, %v877
      %v894 = vmul.f32 %v846, %v878
      %v895 = vmul.f32 %v847, %v879
      %v896 = vmul.f32 %v848, %v880
      %v897 = vmul.f32 %v849, %v881
      %v898 = vmul.f32 %v850, %v882
      %v899 = vpack.c.bf16 %v884, %v883
      %v900 = vpack.c.bf16 %v886, %v885
      %v901 = vpack.c.bf16 %v888, %v887
      %v902 = vpack.c.bf16 %v890, %v889
      %v903 = vpack.c.bf16 %v892, %v891
      %v904 = vpack.c.bf16 %v894, %v893
      %v905 = vpack.c.bf16 %v896, %v895
      %v906 = vpack.c.bf16 %v898, %v897
      %s907 = scalar_lea.vmem %s2, 128
      %v908 = vld [vmem:[%s907] sm:$0xf]
      %v909 = vld [vmem:[%s907 + $0x4] sm:$0xf]
      %v910 = vld [vmem:[%s907 + $0x8] sm:$0xf]
      %v911 = vld [vmem:[%s907 + $0xc] sm:$0xf]
      %v912 = vld [vmem:[%s907 + $0x10] sm:$0xf]
      %v913 = vld [vmem:[%s907 + $0x14] sm:$0xf]
      %v914 = vld [vmem:[%s907 + $0x18] sm:$0xf]
      %v915 = vld [vmem:[%s907 + $0x1c] sm:$0xf]
      %v916 = vld [vmem:[%s907 + $0x20] sm:$0xf]
      %v917 = vld [vmem:[%s907 + $0x24] sm:$0xf]
      %v918 = vld [vmem:[%s907 + $0x28] sm:$0xf]
      %v919 = vld [vmem:[%s907 + $0x2c] sm:$0xf]
      %v920 = vld [vmem:[%s907 + $0x30] sm:$0xf]
      %v921 = vld [vmem:[%s907 + $0x34] sm:$0xf]
      %v922 = vld [vmem:[%s907 + $0x38] sm:$0xf]
      %v923 = vld [vmem:[%s907 + $0x3c] sm:$0xf]
      %v924 = vld [vmem:[%s3 + $0x3] sm:$0x1]
      %v925 = vlaneseq
      %v926 = vshrl.u32 %v925, 7
      %v927 = vsub.s32 0, %v926
      %v928 = vrot.slane %v924, %v927
      %v945 = vunpack.c.l.b16 %v908
      %v946 = vunpack.c.l.b16 %v909
      %v947 = vunpack.c.l.b16 %v910
      %v948 = vunpack.c.l.b16 %v911
      %v949 = vunpack.c.l.b16 %v912
      %v950 = vunpack.c.l.b16 %v913
      %v951 = vunpack.c.l.b16 %v914
      %v952 = vunpack.c.l.b16 %v915
      %v953 = vunpack.c.l.b16 %v916
      %v954 = vunpack.c.l.b16 %v917
      %v955 = vunpack.c.l.b16 %v918
      %v956 = vunpack.c.l.b16 %v919
      %v957 = vunpack.c.l.b16 %v920
      %v958 = vunpack.c.l.b16 %v921
      %v959 = vunpack.c.l.b16 %v922
      %v960 = vunpack.c.l.b16 %v923
      %v961 = vpack.c.b16 %v946, %v945
      %v962 = vpack.c.b16 %v948, %v947
      %v963 = vpack.c.b16 %v950, %v949
      %v964 = vpack.c.b16 %v952, %v951
      %v965 = vpack.c.b16 %v954, %v953
      %v966 = vpack.c.b16 %v956, %v955
      %v967 = vpack.c.b16 %v958, %v957
      %v968 = vpack.c.b16 %v960, %v959
      %977 = vmatprep.subr.bf16.mxu0 0
      %978 = vmatpush1.bf16.msra.mxu0 %v968
      %979 = vmatprep.subr.bf16.mxu0 0
      %980 = vmatpush1.bf16.msra.mxu0 %v967
      %981 = vmatprep.subr.bf16.mxu0 0
      %982 = vmatpush1.bf16.msra.mxu0 %v966
      %983 = vmatprep.subr.bf16.mxu0 0
      %984 = vmatpush1.bf16.msra.mxu0 %v965
      %985 = vmatprep.subr.bf16.mxu0 0
      %986 = vmatpush1.bf16.msra.mxu0 %v964
      %987 = vmatprep.subr.bf16.mxu0 0
      %988 = vmatpush1.bf16.msra.mxu0 %v963
      %989 = vmatprep.subr.bf16.mxu0 0
      %990 = vmatpush1.bf16.msra.mxu0 %v962
      %991 = vmatprep.subr.bf16.mxu0 0
      %992 = vmatpush1.bf16.msra.mxu0 %v961
      %993 = vmatprep.subr.bf16.mxu0 0
      %994 = vmatpush2.bf16.msra.mxu0 0
      %995 = vmatprep.subr.bf16.mxu0 0
      %996 = vmatpush2.bf16.msra.mxu0 0
      %997 = vmatprep.subr.bf16.mxu0 0
      %998 = vmatpush2.bf16.msra.mxu0 0
      %999 = vmatprep.subr.bf16.mxu0 0
      %1000 = vmatpush2.bf16.msra.mxu0 0
      %1001 = vmatprep.subr.bf16.mxu0 0
      %1002 = vmatpush2.bf16.msra.mxu0 0
      %1003 = vmatprep.subr.bf16.mxu0 0
      %1004 = vmatpush2.bf16.msra.mxu0 0
      %1005 = vmatprep.subr.bf16.mxu0 0
      %1006 = vmatpush2.bf16.msra.mxu0 0
      %1007 = vmatprep.subr.bf16.mxu0 0
      %1008 = vmatpush2.bf16.msra.mxu0 0
      %1009 = vmatprep.mubr.bf16.mxu0 0
      %1010 = vmatmul.mubr.bf16.gmra.mxu0 %v899
      %v1011 = vpop.f32.mrf.mxu0
      %v1012 = vadd.f32 %v928, %v1011
      %v1013 = vpop.f32.mrf.mxu0
      %v1014 = vpop.f32.mrf.mxu0
      %v1015 = vadd.f32 %v928, %v1014
      %v1016 = vpop.f32.mrf.mxu0
      %1017 = vmatprep.mubr.bf16.mxu0 0
      %1018 = vmatmul.mubr.bf16.gmra.mxu0 %v900
      %v1019 = vpop.f32.mrf.mxu0
      %v1020 = vadd.f32 %v928, %v1019
      %v1021 = vpop.f32.mrf.mxu0
      %v1022 = vpop.f32.mrf.mxu0
      %v1023 = vadd.f32 %v928, %v1022
      %v1024 = vpop.f32.mrf.mxu0
      %1025 = vmatprep.mubr.bf16.mxu0 0
      %1026 = vmatmul.mubr.bf16.gmra.mxu0 %v901
      %v1027 = vpop.f32.mrf.mxu0
      %v1028 = vadd.f32 %v928, %v1027
      %v1029 = vpop.f32.mrf.mxu0
      %v1030 = vpop.f32.mrf.mxu0
      %v1031 = vadd.f32 %v928, %v1030
      %v1032 = vpop.f32.mrf.mxu0
      %1033 = vmatprep.mubr.bf16.mxu0 0
      %1034 = vmatmul.mubr.bf16.gmra.mxu0 %v902
      %v1035 = vpop.f32.mrf.mxu0
      %v1036 = vadd.f32 %v928, %v1035
      %v1037 = vpop.f32.mrf.mxu0
      %v1038 = vpop.f32.mrf.mxu0
      %v1039 = vadd.f32 %v928, %v1038
      %v1040 = vpop.f32.mrf.mxu0
      %1041 = vmatprep.mubr.bf16.mxu0 0
      %1042 = vmatmul.mubr.bf16.gmra.mxu0 %v903
      %v1043 = vpop.f32.mrf.mxu0
      %v1044 = vadd.f32 %v928, %v1043
      %v1045 = vpop.f32.mrf.mxu0
      %v1046 = vpop.f32.mrf.mxu0
      %v1047 = vadd.f32 %v928, %v1046
      %v1048 = vpop.f32.mrf.mxu0
      %1049 = vmatprep.mubr.bf16.mxu0 0
      %1050 = vmatmul.mubr.bf16.gmra.mxu0 %v904
      %v1051 = vpop.f32.mrf.mxu0
      %v1052 = vadd.f32 %v928, %v1051
      %v1053 = vpop.f32.mrf.mxu0
      %v1054 = vpop.f32.mrf.mxu0
      %v1055 = vadd.f32 %v928, %v1054
      %v1056 = vpop.f32.mrf.mxu0
      %1057 = vmatprep.mubr.bf16.mxu0 0
      %1058 = vmatmul.mubr.bf16.gmra.mxu0 %v905
      %v1059 = vpop.f32.mrf.mxu0
      %v1060 = vadd.f32 %v928, %v1059
      %v1061 = vpop.f32.mrf.mxu0
      %v1062 = vpop.f32.mrf.mxu0
      %v1063 = vadd.f32 %v928, %v1062
      %v1064 = vpop.f32.mrf.mxu0
      %1065 = vmatprep.mubr.bf16.mxu0 0
      %1066 = vmatmul.mubr.bf16.gmra.mxu0 %v906
      %v1067 = vpop.f32.mrf.mxu0
      %v1068 = vadd.f32 %v928, %v1067
      %v1069 = vpop.f32.mrf.mxu0
      %v1070 = vpop.f32.mrf.mxu0
      %v1071 = vadd.f32 %v928, %v1070
      %v1072 = vpop.f32.mrf.mxu0
      %1073 = vdwg.mxu0
      %v1074 = vmul.f32 %v1012, 0.5
      %v1075 = vmul.f32 %v1015, 0.5
      %v1076 = vmul.f32 %v1020, 0.5
      %v1077 = vmul.f32 %v1023, 0.5
      %v1078 = vmul.f32 %v1028, 0.5
      %v1079 = vmul.f32 %v1031, 0.5
      %v1080 = vmul.f32 %v1036, 0.5
      %v1081 = vmul.f32 %v1039, 0.5
      %v1082 = vmul.f32 %v1044, 0.5
      %v1083 = vmul.f32 %v1047, 0.5
      %v1084 = vmul.f32 %v1052, 0.5
      %v1085 = vmul.f32 %v1055, 0.5
      %v1086 = vmul.f32 %v1060, 0.5
      %v1087 = vmul.f32 %v1063, 0.5
      %v1088 = vmul.f32 %v1068, 0.5
      %v1089 = vmul.f32 %v1071, 0.5
      %v1090 = vtanh.pop %v1074
      %v1091 = vtanh.pop %v1075
      %v1092 = vtanh.pop %v1076
      %v1093 = vtanh.pop %v1077
      %v1094 = vtanh.pop %v1078
      %v1095 = vtanh.pop %v1079
      %v1096 = vtanh.pop %v1080
      %v1097 = vtanh.pop %v1081
      %v1098 = vtanh.pop %v1082
      %v1099 = vtanh.pop %v1083
      %v1100 = vtanh.pop %v1084
      %v1101 = vtanh.pop %v1085
      %v1102 = vtanh.pop %v1086
      %v1103 = vtanh.pop %v1087
      %v1104 = vtanh.pop %v1088
      %v1105 = vtanh.pop %v1089
      %v1106 = vadd.f32 %v1090, 1.0
      %v1107 = vadd.f32 %v1091, 1.0
      %v1108 = vadd.f32 %v1092, 1.0
      %v1109 = vadd.f32 %v1093, 1.0
      %v1110 = vadd.f32 %v1094, 1.0
      %v1111 = vadd.f32 %v1095, 1.0
      %v1112 = vadd.f32 %v1096, 1.0
      %v1113 = vadd.f32 %v1097, 1.0
      %v1114 = vadd.f32 %v1098, 1.0
      %v1115 = vadd.f32 %v1099, 1.0
      %v1116 = vadd.f32 %v1100, 1.0
      %v1117 = vadd.f32 %v1101, 1.0
      %v1118 = vadd.f32 %v1102, 1.0
      %v1119 = vadd.f32 %v1103, 1.0
      %v1120 = vadd.f32 %v1104, 1.0
      %v1121 = vadd.f32 %v1105, 1.0
      %v1122 = vmul.f32 %v1074, %v1106
      %v1123 = vmul.f32 %v1075, %v1107
      %v1124 = vmul.f32 %v1076, %v1108
      %v1125 = vmul.f32 %v1077, %v1109
      %v1126 = vmul.f32 %v1078, %v1110
      %v1127 = vmul.f32 %v1079, %v1111
      %v1128 = vmul.f32 %v1080, %v1112
      %v1129 = vmul.f32 %v1081, %v1113
      %v1130 = vmul.f32 %v1082, %v1114
      %v1131 = vmul.f32 %v1083, %v1115
      %v1132 = vmul.f32 %v1084, %v1116
      %v1133 = vmul.f32 %v1085, %v1117
      %v1134 = vmul.f32 %v1086, %v1118
      %v1135 = vmul.f32 %v1087, %v1119
      %v1136 = vmul.f32 %v1088, %v1120
      %v1137 = vmul.f32 %v1089, %v1121
      %v1138 = vpack.c.bf16 %v1123, %v1122
      %v1139 = vpack.c.bf16 %v1125, %v1124
      %v1140 = vpack.c.bf16 %v1127, %v1126
      %v1141 = vpack.c.bf16 %v1129, %v1128
      %v1142 = vpack.c.bf16 %v1131, %v1130
      %v1143 = vpack.c.bf16 %v1133, %v1132
      %v1144 = vpack.c.bf16 %v1135, %v1134
      %v1145 = vpack.c.bf16 %v1137, %v1136
      %s1146 = scalar_lea.vmem %s2, 192
      %v1147 = vld [vmem:[%s1146] sm:$0xf]
      %v1148 = vld [vmem:[%s1146 + $0x4] sm:$0xf]
      %v1149 = vld [vmem:[%s1146 + $0x8] sm:$0xf]
      %v1150 = vld [vmem:[%s1146 + $0xc] sm:$0xf]
      %v1151 = vld [vmem:[%s1146 + $0x10] sm:$0xf]
      %v1152 = vld [vmem:[%s1146 + $0x14] sm:$0xf]
      %v1153 = vld [vmem:[%s1146 + $0x18] sm:$0xf]
      %v1154 = vld [vmem:[%s1146 + $0x1c] sm:$0xf]
      %v1155 = vld [vmem:[%s1146 + $0x20] sm:$0xf]
      %v1156 = vld [vmem:[%s1146 + $0x24] sm:$0xf]
      %v1157 = vld [vmem:[%s1146 + $0x28] sm:$0xf]
      %v1158 = vld [vmem:[%s1146 + $0x2c] sm:$0xf]
      %v1159 = vld [vmem:[%s1146 + $0x30] sm:$0xf]
      %v1160 = vld [vmem:[%s1146 + $0x34] sm:$0xf]
      %v1161 = vld [vmem:[%s1146 + $0x38] sm:$0xf]
      %v1162 = vld [vmem:[%s1146 + $0x3c] sm:$0xf]
      %v1163 = vld [vmem:[%s3 + $0x4] sm:$0x1]
      %v1164 = vlaneseq
      %v1165 = vshrl.u32 %v1164, 7
      %v1166 = vsub.s32 0, %v1165
      %v1167 = vrot.slane %v1163, %v1166
      %v1184 = vunpack.c.l.b16 %v1147
      %v1185 = vunpack.c.l.b16 %v1148
      %v1186 = vunpack.c.l.b16 %v1149
      %v1187 = vunpack.c.l.b16 %v1150
      %v1188 = vunpack.c.l.b16 %v1151
      %v1189 = vunpack.c.l.b16 %v1152
      %v1190 = vunpack.c.l.b16 %v1153
      %v1191 = vunpack.c.l.b16 %v1154
      %v1192 = vunpack.c.l.b16 %v1155
      %v1193 = vunpack.c.l.b16 %v1156
      %v1194 = vunpack.c.l.b16 %v1157
      %v1195 = vunpack.c.l.b16 %v1158
      %v1196 = vunpack.c.l.b16 %v1159
      %v1197 = vunpack.c.l.b16 %v1160
      %v1198 = vunpack.c.l.b16 %v1161
      %v1199 = vunpack.c.l.b16 %v1162
      %v1200 = vpack.c.b16 %v1185, %v1184
      %v1201 = vpack.c.b16 %v1187, %v1186
      %v1202 = vpack.c.b16 %v1189, %v1188
      %v1203 = vpack.c.b16 %v1191, %v1190
      %v1204 = vpack.c.b16 %v1193, %v1192
      %v1205 = vpack.c.b16 %v1195, %v1194
      %v1206 = vpack.c.b16 %v1197, %v1196
      %v1207 = vpack.c.b16 %v1199, %v1198
      %1216 = vmatprep.subr.bf16.mxu0 0
      %1217 = vmatpush1.bf16.msra.mxu0 %v1207
      %1218 = vmatprep.subr.bf16.mxu0 0
      %1219 = vmatpush1.bf16.msra.mxu0 %v1206
      %1220 = vmatprep.subr.bf16.mxu0 0
      %1221 = vmatpush1.bf16.msra.mxu0 %v1205
      %1222 = vmatprep.subr.bf16.mxu0 0
      %1223 = vmatpush1.bf16.msra.mxu0 %v1204
      %1224 = vmatprep.subr.bf16.mxu0 0
      %1225 = vmatpush1.bf16.msra.mxu0 %v1203
      %1226 = vmatprep.subr.bf16.mxu0 0
      %1227 = vmatpush1.bf16.msra.mxu0 %v1202
      %1228 = vmatprep.subr.bf16.mxu0 0
      %1229 = vmatpush1.bf16.msra.mxu0 %v1201
      %1230 = vmatprep.subr.bf16.mxu0 0
      %1231 = vmatpush1.bf16.msra.mxu0 %v1200
      %1232 = vmatprep.subr.bf16.mxu0 0
      %1233 = vmatpush2.bf16.msra.mxu0 0
      %1234 = vmatprep.subr.bf16.mxu0 0
      %1235 = vmatpush2.bf16.msra.mxu0 0
      %1236 = vmatprep.subr.bf16.mxu0 0
      %1237 = vmatpush2.bf16.msra.mxu0 0
      %1238 = vmatprep.subr.bf16.mxu0 0
      %1239 = vmatpush2.bf16.msra.mxu0 0
      %1240 = vmatprep.subr.bf16.mxu0 0
      %1241 = vmatpush2.bf16.msra.mxu0 0
      %1242 = vmatprep.subr.bf16.mxu0 0
      %1243 = vmatpush2.bf16.msra.mxu0 0
      %1244 = vmatprep.subr.bf16.mxu0 0
      %1245 = vmatpush2.bf16.msra.mxu0 0
      %1246 = vmatprep.subr.bf16.mxu0 0
      %1247 = vmatpush2.bf16.msra.mxu0 0
      %1248 = vmatprep.mubr.bf16.mxu0 0
      %1249 = vmatmul.mubr.bf16.gmra.mxu0 %v1138
      %v1250 = vpop.f32.mrf.mxu0
      %v1251 = vadd.f32 %v1167, %v1250
      %v1252 = vpop.f32.mrf.mxu0
      %v1253 = vpop.f32.mrf.mxu0
      %v1254 = vadd.f32 %v1167, %v1253
      %v1255 = vpop.f32.mrf.mxu0
      %1256 = vmatprep.mubr.bf16.mxu0 0
      %1257 = vmatmul.mubr.bf16.gmra.mxu0 %v1139
      %v1258 = vpop.f32.mrf.mxu0
      %v1259 = vadd.f32 %v1167, %v1258
      %v1260 = vpop.f32.mrf.mxu0
      %v1261 = vpop.f32.mrf.mxu0
      %v1262 = vadd.f32 %v1167, %v1261
      %v1263 = vpop.f32.mrf.mxu0
      %1264 = vmatprep.mubr.bf16.mxu0 0
      %1265 = vmatmul.mubr.bf16.gmra.mxu0 %v1140
      %v1266 = vpop.f32.mrf.mxu0
      %v1267 = vadd.f32 %v1167, %v1266
      %v1268 = vpop.f32.mrf.mxu0
      %v1269 = vpop.f32.mrf.mxu0
      %v1270 = vadd.f32 %v1167, %v1269
      %v1271 = vpop.f32.mrf.mxu0
      %1272 = vmatprep.mubr.bf16.mxu0 0
      %1273 = vmatmul.mubr.bf16.gmra.mxu0 %v1141
      %v1274 = vpop.f32.mrf.mxu0
      %v1275 = vadd.f32 %v1167, %v1274
      %v1276 = vpop.f32.mrf.mxu0
      %v1277 = vpop.f32.mrf.mxu0
      %v1278 = vadd.f32 %v1167, %v1277
      %v1279 = vpop.f32.mrf.mxu0
      %1280 = vmatprep.mubr.bf16.mxu0 0
      %1281 = vmatmul.mubr.bf16.gmra.mxu0 %v1142
      %v1282 = vpop.f32.mrf.mxu0
      %v1283 = vadd.f32 %v1167, %v1282
      %v1284 = vpop.f32.mrf.mxu0
      %v1285 = vpop.f32.mrf.mxu0
      %v1286 = vadd.f32 %v1167, %v1285
      %v1287 = vpop.f32.mrf.mxu0
      %1288 = vmatprep.mubr.bf16.mxu0 0
      %1289 = vmatmul.mubr.bf16.gmra.mxu0 %v1143
      %v1290 = vpop.f32.mrf.mxu0
      %v1291 = vadd.f32 %v1167, %v1290
      %v1292 = vpop.f32.mrf.mxu0
      %v1293 = vpop.f32.mrf.mxu0
      %v1294 = vadd.f32 %v1167, %v1293
      %v1295 = vpop.f32.mrf.mxu0
      %1296 = vmatprep.mubr.bf16.mxu0 0
      %1297 = vmatmul.mubr.bf16.gmra.mxu0 %v1144
      %v1298 = vpop.f32.mrf.mxu0
      %v1299 = vadd.f32 %v1167, %v1298
      %v1300 = vpop.f32.mrf.mxu0
      %v1301 = vpop.f32.mrf.mxu0
      %v1302 = vadd.f32 %v1167, %v1301
      %v1303 = vpop.f32.mrf.mxu0
      %1304 = vmatprep.mubr.bf16.mxu0 0
      %1305 = vmatmul.mubr.bf16.gmra.mxu0 %v1145
      %v1306 = vpop.f32.mrf.mxu0
      %v1307 = vadd.f32 %v1167, %v1306
      %v1308 = vpop.f32.mrf.mxu0
      %v1309 = vpop.f32.mrf.mxu0
      %v1310 = vadd.f32 %v1167, %v1309
      %v1311 = vpop.f32.mrf.mxu0
      %1312 = vdwg.mxu0
      %1313 = vst [vmem:[%s199] sm:$0xff] %v1251
      %1314 = vst [vmem:[%s199 + $0x8] sm:$0xff] %v1254
      %1315 = vst [vmem:[%s199 + $0x10] sm:$0xff] %v1259
      %1316 = vst [vmem:[%s199 + $0x18] sm:$0xff] %v1262
      %1317 = vst [vmem:[%s199 + $0x20] sm:$0xff] %v1267
      %1318 = vst [vmem:[%s199 + $0x28] sm:$0xff] %v1270
      %1319 = vst [vmem:[%s199 + $0x30] sm:$0xff] %v1275
      %1320 = vst [vmem:[%s199 + $0x38] sm:$0xff] %v1278
      %1321 = vst [vmem:[%s199 + $0x40] sm:$0xff] %v1283
      %1322 = vst [vmem:[%s199 + $0x48] sm:$0xff] %v1286
      %1323 = vst [vmem:[%s199 + $0x50] sm:$0xff] %v1291
      %1324 = vst [vmem:[%s199 + $0x58] sm:$0xff] %v1294
      %1325 = vst [vmem:[%s199 + $0x60] sm:$0xff] %v1299
      %1326 = vst [vmem:[%s199 + $0x68] sm:$0xff] %v1302
      %1327 = vst [vmem:[%s199 + $0x70] sm:$0xff] %v1307
      %1328 = vst [vmem:[%s199 + $0x78] sm:$0xff] %v1310
      %s1329 = smul.u32 16, %s15
      %p1330 = scmp.lt.s32.totalorder %s1329, 31
      %s1331 = scalar_select %p1330, %s1329, 31
      %s1332 = smul.addr %s1331, 8
      %s1333 = scalar_lea.vmem %s4, %s1332
      // Predicated region
      $region37: #{net_forward.1} parent=35 // pred_check
        %p1334 = pneg %p122
      $region38: #{net_forward.1} parent=35 // pred_check_branch
        %1336 = sbr.rel (%p1334) target = $region40
      $region39: #{net_forward.1} parent=35 // pred_region
        %s1337 = smul.u32 16, %s15
      $region40: #{net_forward.1} parent=35 // pred_fallthru
        _
    $region36: #{net_forward.1} parent=5 // pred_fallthru
      _
    %p1338 = scmp.le.s32.totalorder 2, %s10
    // Predicated region
    $region41: #{net_forward.1} parent=5 // pred_check
      %p1339 = pneg %p1338
    $region42: #{net_forward.1} parent=5 // pred_check_branch
      %1341 = sbr.rel (%p1339) target = $region44
    $region43: #{net_forward.1} parent=5 // pred_region
      %s1342 = ssub.s32 %s10, 2
      // Predicated region
      $region45: #{net_forward.1} parent=43 // pred_check
        %p1343 = pneg %p128
      $region46: #{net_forward.1} parent=43 // pred_check_branch
        %1345 = sbr.rel (%p1343) target = $region48
      $region47: #{net_forward.1} parent=43 // pred_region
        %s1346 = smul.u32 16, %s16
        %p1347 = scmp.lt.s32.totalorder %s1346, 31
        %s1348 = scalar_select %p1347, %s1346, 31
        %s1349 = smul.addr %s1348, 8
        %s1350 = scalar_lea.vmem %s4, %s1349
      $region48: #{net_forward.1} parent=43 // pred_fallthru
        _
    $region44: #{net_forward.1} parent=5 // pred_fallthru
      _
  $region6: #{net_forward.1} parent=0 // loop_footer
    %s14 = sadd.s32 1, %s10
  $region7: #{net_forward.1} parent=0 // loop_footer_branch
    %9 = sbr.rel target = $region3
  $region8: #{net_forward.1} parent=0 // loop_exit
    _

</llo_original>
